<compile_context>
chip_gen: v5e
topology: v5e:2x2
jax: 0.10.0
libtpu: 0.0.40
codegen_flags: <defaults>
</compile_context>

<pallas_src>
import functools

import jax
import jax.numpy as jnp
from jax import lax
from jax.experimental import pallas as pl
from jax.experimental.pallas import tpu as pltpu


LEAKY_SLOPE = 0.01          # torch.nn.LeakyReLU default negative_slope
LANE = 128
SUB_ROWS = 256              # in-kernel sub-tile (rows) for the h1/h2 chain


def _leaky_relu(x):
    return jnp.where(x >= 0, x, LEAKY_SLOPE * x)


def _round_up(n, m):
    return ((n + m - 1) // m) * m


# ----------------------------------------------------------------------------
# Best-effort hardware introspection (safe fallbacks -> previous behaviour).
# ----------------------------------------------------------------------------
def _vmem_capacity_bytes():
    try:
        info = pltpu.get_tpu_info()
        for attr in ("vmem_capacity_bytes", "vmem_bytes", "vmem_size_bytes"):
            v = getattr(info, attr, None)
            if isinstance(v, int) and not isinstance(v, bool) and v > 0:
                return int(v)
    except Exception:
        pass
    return 64 * 1024 * 1024        # v7x per-core physical: safe lower bound


def _vmem_budget_bytes():
    # Leave headroom below physical VMEM; also respects v7x's 64 MiB.
    return int(min(0.75 * _vmem_capacity_bytes(), 100 * 1024 * 1024))


def _num_tensorcores():
    try:
        info = pltpu.get_tpu_info()
        for attr in ("num_cores", "num_tensor_cores", "tensorcore_count",
                     "cores_per_chip"):
            n = getattr(info, attr, None)
            if isinstance(n, int) and not isinstance(n, bool) and 1 <= n <= 16:
                return int(n)
    except Exception:
        pass
    try:
        kind = jax.devices()[0].device_kind.lower()
        if "v7" in kind:
            return 2
    except Exception:
        pass
    return 1


def _default_compute_dtype():
    # v5e: no bf16 VPU/EUP and a 128x128 MXU with slack at these tiny shapes,
    # so f32 drops two cast passes.  v6e/v7x: bf16 MXU path.
    try:
        kind = jax.devices()[0].device_kind.lower()
        if "v5e" in kind or "v5 lite" in kind or "v5lite" in kind:
            return jnp.float32
    except Exception:
        pass
    return jnp.bfloat16


# ----------------------------------------------------------------------------
# Kernel
# ----------------------------------------------------------------------------
def policy_net_kernel(x_ref,
                      w1_ref, b1_ref,
                      w2_ref, b2_ref,
                      wh_ref, bh_ref,
                      out_ref,
                      *, action_space, compute_dtype, approx_recip, sub_b):
    # x tile: [TB, obs].  Weights are [in, out] (transposed vs. torch Linear).
    tb = x_ref.shape[0]
    out_w = out_ref.shape[1]
    n_sub = tb // sub_b                      # guaranteed exact by wrapper

    # Hoist resident weights / biases / column mask out of the sub-tile loop
    # (JAX does not CSE broadcast_in_dim inside loops).
    w1 = w1_ref[...]
    b1 = b1_ref[...]
    w2 = w2_ref[...]
    b2 = b2_ref[...]
    wh = wh_ref[...]                         # f32 head weights
    bh = bh_ref[...]
    col = lax.broadcasted_iota(jnp.int32, (sub_b, out_w), 1)
    is_mean = col < action_space

    def body(j, carry):
        r0 = pl.multiple_of(j * sub_b, sub_b)

        x = x_ref[pl.ds(r0, sub_b), :].astype(compute_dtype)      # [sub, obs]

        # shared_net (bf16 matmuls on v6e/v7x, f32 accumulation; f32 on v5e)
        h1 = jnp.dot(x, w1, preferred_element_type=jnp.float32) + b1
        h1 = _leaky_relu(h1)                                       # [sub, 128]

        h2 = jnp.dot(h1.astype(compute_dtype), w2,
                     preferred_element_type=jnp.float32) + b2
        h2 = _leaky_relu(h2)                                       # [sub, 64]

        # fused heads, kept in f32 (negligible compute; keeps value precise):
        # columns [0, A) = policy mean (Softsign), column A = value.
        h = jnp.dot(h2, wh, preferred_element_type=jnp.float32) + bh

        soft = h * pl.reciprocal(1.0 + jnp.abs(h), approx=approx_recip)
        out_ref[pl.ds(r0, sub_b), :] = jnp.where(is_mean, soft, h).astype(
            out_ref.dtype)
        return carry

    lax.fori_loop(0, n_sub, body, None, unroll=True)


# ----------------------------------------------------------------------------
# Wrapper
# ----------------------------------------------------------------------------
def policy_network_forward(state, params, *, block_b=4096, compute_dtype=None):
    """state: [B, obs_space] float.  Returns (mean [B, action], value [B, 1])."""
    if compute_dtype is None:
        compute_dtype = _default_compute_dtype()
    exact = jnp.dtype(compute_dtype) == jnp.dtype(jnp.float32)

    B, obs = state.shape
    H1 = params["w1"].shape[1]          # 128
    H2 = params["w2"].shape[1]          # 64
    A = params["wm"].shape[1]           # action_space
    out_w = A + 1

    # Shared-net weights in matmul dtype; head weights + all biases stay f32.
    w1 = params["w1"].astype(compute_dtype)
    w2 = params["w2"].astype(compute_dtype)
    w_head = jnp.concatenate([params["wm"], params["wv"]], axis=1)   # [64, A+1]
    b1, b2 = params["b1"], params["b2"]
    b_head = jnp.concatenate([params["bm"], params["bv"]], axis=1)   # [1, A+1]

    # ---- batch-tile selection ------------------------------------------------
    # Per-row VMEM for the double-buffered x and out tiles (lane-padded).
    in_itemsize = jnp.dtype(state.dtype).itemsize
    per_row = 2 * _round_up(obs, LANE) * in_itemsize + 2 * _round_up(out_w, LANE) * 4
    budget = _vmem_budget_bytes()
    rows_cap = max(8, (((budget - (4 << 20)) // per_row) // 8) * 8)

    tb_cap = min(max(8, block_b), _round_up(B, 8), rows_cap)

    # v7x: make sure the "parallel" batch axis gives both TensorCores work.
    cores = _num_tensorcores()
    if cores >= 2 and B >= 2 * 8:
        tb_cap = min(tb_cap, _round_up(-(-B // cores), 8))

    # Make the tile a multiple of the in-kernel sub-tile so the loop is exact.
    if tb_cap >= SUB_ROWS:
        tb = (tb_cap // SUB_ROWS) * SUB_ROWS
    else:
        tb = _round_up(tb_cap, 8)
    sub_b = min(SUB_ROWS, tb)

    grid = (pl.cdiv(B, tb),)

    x_spec = pl.BlockSpec((tb, obs), lambda i: (i, 0))
    out_spec = pl.BlockSpec((tb, out_w), lambda i: (i, 0))

    def resident(a):
        # Full array, constant block index -> stays VMEM-resident across grid.
        return pl.BlockSpec(a.shape, lambda i, _nd=a.ndim: (0,) * _nd)

    def nbytes(a):
        return a.size * a.dtype.itemsize

    flops = 2 * B * (obs * H1 + H1 * H2 + H2 * out_w)
    bytes_accessed = (nbytes(state) + B * out_w * 4
                      + nbytes(w1) + nbytes(w2) + nbytes(w_head)
                      + nbytes(b1) + nbytes(b2) + nbytes(b_head))

    kernel = functools.partial(
        policy_net_kernel,
        action_space=A,
        compute_dtype=compute_dtype,
        approx_recip=not exact,
        sub_b=sub_b,
    )

    fused = pl.pallas_call(
        kernel,
        out_shape=jax.ShapeDtypeStruct((B, out_w), jnp.float32),
        grid=grid,
        in_specs=[x_spec,
                  resident(w1), resident(b1),
                  resident(w2), resident(b2),
                  resident(w_head), resident(b_head)],
        out_specs=out_spec,
        compiler_params=pltpu.CompilerParams(
            dimension_semantics=("parallel",),
            vmem_limit_bytes=int(budget)),
        cost_estimate=pl.CostEstimate(
            flops=flops, transcendentals=B * out_w,
            bytes_accessed=bytes_accessed),
    )(state, w1, b1, w2, b2, w_head, b_head)

    return fused[:, :A], fused[:, A:]


# ----------------------------------------------------------------------------
# Parameter init (PyTorch-style) and pure-JAX reference
# ----------------------------------------------------------------------------
def init_params(key, obs_space, action_space):
    """uniform(-1/sqrt(fan_in), 1/sqrt(fan_in)); weights stored [in, out]."""
    def linear(k, fan_in, fan_out):
        kw, kb = jax.random.split(k)
        bound = 1.0 / jnp.sqrt(fan_in)
        w = jax.random.uniform(kw, (fan_in, fan_out), jnp.float32, -bound, bound)
        b = jax.random.uniform(kb, (1, fan_out), jnp.float32, -bound, bound)
        return w, b

    k1, k2, k3, k4 = jax.random.split(key, 4)
    w1, b1 = linear(k1, obs_space, 128)
    w2, b2 = linear(k2, 128, 64)
    wm, bm = linear(k3, 64, action_space)
    wv, bv = linear(k4, 64, 1)
    return dict(w1=w1, b1=b1, w2=w2, b2=b2, wm=wm, bm=bm, wv=wv, bv=bv)


def _reference_forward(state, p):
    h1pre = state @ p["w1"] + p["b1"]
    h1 = jnp.where(h1pre >= 0, h1pre, LEAKY_SLOPE * h1pre)
    h2pre = h1 @ p["w2"] + p["b2"]
    h2 = jnp.where(h2pre >= 0, h2pre, LEAKY_SLOPE * h2pre)
    m = h2 @ p["wm"] + p["bm"]
    mean = m / (1.0 + jnp.abs(m))
    value = h2 @ p["wv"] + p["bv"]
    return mean, value


if __name__ == "__main__":
    obs_space = 32
    action_space = 4

    key = jax.random.PRNGKey(0)
    k_params, k_state = jax.random.split(key)
    params = init_params(k_params, obs_space, action_space)

    # batch=8   : single grid step, tiny tile.
    # batch=520 : multi-step grid, in-kernel sub-tile loop, partial last tile.
    for batch in (8, 520):
        state = jax.random.normal(jax.random.fold_in(k_state, batch),
                                  (batch, obs_space), jnp.float32)

        # Exact path (f32 matmuls, exact reciprocal).
        mean32, value32 = policy_network_forward(state, params,
                                                 compute_dtype=jnp.float32)
        # Fast path (auto: bf16 shared-net matmuls on v6e/v7x, f32 on v5e).
        mean_f, value_f = policy_network_forward(state, params)
        jax.block_until_ready((mean32, value32, mean_f, value_f))

        mean_ref, value_ref = _reference_forward(state, params)
        assert mean32.shape == (batch, action_space) and value32.shape == (batch, 1)
        assert mean_f.shape == (batch, action_space) and value_f.shape == (batch, 1)
        assert jnp.allclose(mean32, mean_ref, atol=1e-5, rtol=1e-5)
        assert jnp.allclose(value32, value_ref, atol=1e-5, rtol=1e-5)
        assert jnp.allclose(mean_f, mean_ref, atol=3e-2, rtol=3e-2)
        assert jnp.allclose(value_f, value_ref, atol=3e-2, rtol=3e-2)

    print("KERNEL_OK")
</pallas_src>

<mosaic_0001>
module attributes {stable_mosaic.version = 11 : i64} {
  func.func @policy_net_kernel(%arg0: i32, %arg1: memref<8x32xf32, #tpu.memory_space<vmem>>, %arg2: memref<32x128xf32, #tpu.memory_space<vmem>>, %arg3: memref<1x128xf32, #tpu.memory_space<vmem>>, %arg4: memref<128x64xf32, #tpu.memory_space<vmem>>, %arg5: memref<1x64xf32, #tpu.memory_space<vmem>>, %arg6: memref<64x5xf32, #tpu.memory_space<vmem>>, %arg7: memref<1x5xf32, #tpu.memory_space<vmem>>, %arg8: memref<8x5xf32, #tpu.memory_space<vmem>>) attributes {dimension_semantics = [#tpu.dimension_semantics<parallel>], iteration_bounds = array<i64: 1>, scalar_prefetch = 0 : i64, scratch_operands = 0 : i64, tpu.core_type = #tpu.core_type<tc>, window_params = [{transform_indices = @transform_0, window_bounds = array<i64: 8, 32>}, {pipeline_mode = #tpu.pipeline_mode<synchronous>, transform_indices = @transform_1, window_bounds = array<i64: 32, 128>}, {pipeline_mode = #tpu.pipeline_mode<synchronous>, transform_indices = @transform_2, window_bounds = array<i64: 1, 128>}, {pipeline_mode = #tpu.pipeline_mode<synchronous>, transform_indices = @transform_3, window_bounds = array<i64: 128, 64>}, {pipeline_mode = #tpu.pipeline_mode<synchronous>, transform_indices = @transform_4, window_bounds = array<i64: 1, 64>}, {pipeline_mode = #tpu.pipeline_mode<synchronous>, transform_indices = @transform_5, window_bounds = array<i64: 64, 5>}, {pipeline_mode = #tpu.pipeline_mode<synchronous>, transform_indices = @transform_6, window_bounds = array<i64: 1, 5>}, {transform_indices = @transform_7, window_bounds = array<i64: 8, 5>}]} {
    %c0 = arith.constant 0 : index
    %c0_0 = arith.constant 0 : index
    %0 = vector.load %arg2[%c0, %c0_0] : memref<32x128xf32, #tpu.memory_space<vmem>>, vector<32x128xf32>
    %c0_1 = arith.constant 0 : index
    %c0_2 = arith.constant 0 : index
    %1 = vector.load %arg3[%c0_1, %c0_2] : memref<1x128xf32, #tpu.memory_space<vmem>>, vector<1x128xf32>
    %c0_3 = arith.constant 0 : index
    %c0_4 = arith.constant 0 : index
    %2 = vector.load %arg4[%c0_3, %c0_4] : memref<128x64xf32, #tpu.memory_space<vmem>>, vector<128x64xf32>
    %c0_5 = arith.constant 0 : index
    %c0_6 = arith.constant 0 : index
    %3 = vector.load %arg5[%c0_5, %c0_6] : memref<1x64xf32, #tpu.memory_space<vmem>>, vector<1x64xf32>
    %c0_7 = arith.constant 0 : index
    %c0_8 = arith.constant 0 : index
    %4 = vector.load %arg6[%c0_7, %c0_8] : memref<64x5xf32, #tpu.memory_space<vmem>>, vector<64x5xf32>
    %c0_9 = arith.constant 0 : index
    %c0_10 = arith.constant 0 : index
    %5 = vector.load %arg7[%c0_9, %c0_10] : memref<1x5xf32, #tpu.memory_space<vmem>>, vector<1x5xf32>
    %6 = tpu.iota {dimensions = array<i32: 1>} : vector<8x5xi32>
    %c4_i32 = arith.constant 4 : i32
    %7 = vector.broadcast %c4_i32 : i32 to vector<8x5xi32>
    %8 = arith.cmpi slt, %6, %7 : vector<8x5xi32>
    %c0_i32 = arith.constant 0 : i32
    %c8_i32 = arith.constant 8 : i32
    %9 = arith.muli %c0_i32, %c8_i32 : i32
    %10 = tpu.assume_multiple %9, 8 : i32
    %11 = arith.index_cast %10 : i32 to index
    %c0_11 = arith.constant 0 : index
    %12 = vector.load %arg1[%11, %c0_11] : memref<8x32xf32, #tpu.memory_space<vmem>>, vector<8x32xf32>
    %cst = arith.constant dense<0.000000e+00> : vector<8x128xf32>
    %13 = tpu.matmul %12, %0, %cst {dimension_numbers = #tpu.dot_dimension_numbers<[1], [0], [0], [1], [0, 0, 1, 1], [], []>} : vector<8x32xf32>, vector<32x128xf32>, vector<8x128xf32> -> vector<8x128xf32>
    %14 = vector.broadcast %1 : vector<1x128xf32> to vector<8x128xf32>
    %15 = arith.addf %13, %14 : vector<8x128xf32>
    %cst_12 = arith.constant 0.000000e+00 : f32
    %16 = vector.broadcast %cst_12 : f32 to vector<8x128xf32>
    %17 = arith.cmpf oge, %15, %16 : vector<8x128xf32>
    %cst_13 = arith.constant 0.00999999977 : f32
    %18 = vector.broadcast %cst_13 : f32 to vector<8x128xf32>
    %19 = arith.mulf %18, %15 : vector<8x128xf32>
    %20 = arith.select %17, %15, %19 : vector<8x128xi1>, vector<8x128xf32>
    %cst_14 = arith.constant dense<0.000000e+00> : vector<8x64xf32>
    %21 = tpu.matmul %20, %2, %cst_14 {dimension_numbers = #tpu.dot_dimension_numbers<[1], [0], [0], [1], [0, 0, 1, 1], [], []>} : vector<8x128xf32>, vector<128x64xf32>, vector<8x64xf32> -> vector<8x64xf32>
    %22 = vector.broadcast %3 : vector<1x64xf32> to vector<8x64xf32>
    %23 = arith.addf %21, %22 : vector<8x64xf32>
    %cst_15 = arith.constant 0.000000e+00 : f32
    %24 = vector.broadcast %cst_15 : f32 to vector<8x64xf32>
    %25 = arith.cmpf oge, %23, %24 : vector<8x64xf32>
    %cst_16 = arith.constant 0.00999999977 : f32
    %26 = vector.broadcast %cst_16 : f32 to vector<8x64xf32>
    %27 = arith.mulf %26, %23 : vector<8x64xf32>
    %28 = arith.select %25, %23, %27 : vector<8x64xi1>, vector<8x64xf32>
    %cst_17 = arith.constant dense<0.000000e+00> : vector<8x5xf32>
    %29 = tpu.matmul %28, %4, %cst_17 {dimension_numbers = #tpu.dot_dimension_numbers<[1], [0], [0], [1], [0, 0, 1, 1], [], []>} : vector<8x64xf32>, vector<64x5xf32>, vector<8x5xf32> -> vector<8x5xf32>
    %30 = vector.broadcast %5 : vector<1x5xf32> to vector<8x5xf32>
    %31 = arith.addf %29, %30 : vector<8x5xf32>
    %32 = math.absf %31 : vector<8x5xf32>
    %cst_18 = arith.constant 1.000000e+00 : f32
    %33 = vector.broadcast %cst_18 : f32 to vector<8x5xf32>
    %34 = arith.addf %33, %32 : vector<8x5xf32>
    %35 = tpu.reciprocal %34 : vector<8x5xf32> -> vector<8x5xf32>
    %36 = arith.mulf %31, %35 : vector<8x5xf32>
    %37 = arith.select %8, %36, %31 : vector<8x5xi1>, vector<8x5xf32>
    %38 = arith.index_cast %10 : i32 to index
    %c0_19 = arith.constant 0 : index
    %39 = vector.load %arg8[%38, %c0_19] : memref<8x5xf32, #tpu.memory_space<vmem>>, vector<8x5xf32>
    tpu.vector_store %arg8[%38, %c0_19], %37 {strides = array<i32>} : memref<8x5xf32, #tpu.memory_space<vmem>>, vector<8x5xf32>,
    %c1_i32 = arith.constant 1 : i32
    return
  }
  func.func @transform_0(%arg0: i32) -> (i32, i32) {
    %c0_i32 = arith.constant 0 : i32
    %c0_i32_0 = arith.constant 0 : i32
    return %arg0, %c0_i32 : i32, i32
  }
  func.func @transform_1(%arg0: i32) -> (i32, i32) {
    %c0_i32 = arith.constant 0 : i32
    %c0_i32_0 = arith.constant 0 : i32
    %c0_i32_1 = arith.constant 0 : i32
    return %c0_i32, %c0_i32_0 : i32, i32
  }
  func.func @transform_2(%arg0: i32) -> (i32, i32) {
    %c0_i32 = arith.constant 0 : i32
    %c0_i32_0 = arith.constant 0 : i32
    %c0_i32_1 = arith.constant 0 : i32
    return %c0_i32, %c0_i32_0 : i32, i32
  }
  func.func @transform_3(%arg0: i32) -> (i32, i32) {
    %c0_i32 = arith.constant 0 : i32
    %c0_i32_0 = arith.constant 0 : i32
    %c0_i32_1 = arith.constant 0 : i32
    return %c0_i32, %c0_i32_0 : i32, i32
  }
  func.func @transform_4(%arg0: i32) -> (i32, i32) {
    %c0_i32 = arith.constant 0 : i32
    %c0_i32_0 = arith.constant 0 : i32
    %c0_i32_1 = arith.constant 0 : i32
    return %c0_i32, %c0_i32_0 : i32, i32
  }
  func.func @transform_5(%arg0: i32) -> (i32, i32) {
    %c0_i32 = arith.constant 0 : i32
    %c0_i32_0 = arith.constant 0 : i32
    %c0_i32_1 = arith.constant 0 : i32
    return %c0_i32, %c0_i32_0 : i32, i32
  }
  func.func @transform_6(%arg0: i32) -> (i32, i32) {
    %c0_i32 = arith.constant 0 : i32
    %c0_i32_0 = arith.constant 0 : i32
    %c0_i32_1 = arith.constant 0 : i32
    return %c0_i32, %c0_i32_0 : i32, i32
  }
  func.func @transform_7(%arg0: i32) -> (i32, i32) {
    %c0_i32 = arith.constant 0 : i32
    %c0_i32_0 = arith.constant 0 : i32
    return %arg0, %c0_i32 : i32, i32
  }
}

</mosaic_0001>

<llo_original>
// kernel: tpu_custom_call.1
$region0: #{tpu_custom_call.1}
  #allocation0 [shape = 'u32[]', space=smem, size = 0x4, offset = 0x4, fixed_abs, tag = 'smem constant byte address 0x4 - core index']
  #allocation1 [shape = 'u32[72,128]{1,0:T(1,128)}', space=vmem, size = 0x9000, scoped, tag = 'internal scratch']
  %s0 = inlined_call_operand.vmem [shape: f32[8,32], index: 0, kind: input, shape index: {}]
  %s1 = inlined_call_operand.vmem [shape: f32[32,128], index: 1, kind: input, shape index: {}]
  %s2 = inlined_call_operand.vmem [shape: f32[1,128], index: 2, kind: input, shape index: {}]
  %s3 = inlined_call_operand.vmem [shape: f32[128,64], index: 3, kind: input, shape index: {}]
  %s4 = inlined_call_operand.vmem [shape: f32[1,64], index: 4, kind: input, shape index: {}]
  %s5 = inlined_call_operand.vmem [shape: f32[64,5], index: 5, kind: input, shape index: {}]
  %s6 = inlined_call_operand.vmem [shape: f32[1,5], index: 6, kind: input, shape index: {}]
  %s7 = inlined_call_operand.hbm [shape: f32[8,5], index: 7, kind: output, shape index: {}]
  %s8 = sld [smem:[#allocation0]]
  $region38: #{tpu_custom_call.1} parent=0
    _
  %s10 = ssub.s32 1, %s8
  %s11 = scalar_select 0, %s10, %s8
  $region1: #{tpu_custom_call.1} parent=0
    #allocation2 [shape = 'u8[4096]{0}', space=vmem, size = 0x1000, scoped, tag = 'output window, operand 0, single buffered']
    #allocation3 [shape = 's32[1]{0}', space=sflag, size = 0x4, scoped, tag = 'scoped memory for tpu_custom_call.1']
    %12 = vsyncpa [#allocation3], 0
    // Predicated region
    $region2: #{tpu_custom_call.1} parent=1 // pred_check
      _
    $region3: #{tpu_custom_call.1} parent=1 // pred_check_branch
      %14 = sbr.rel (0) target = $region5
    $region4: #{tpu_custom_call.1} parent=1 // pred_region
      _
    $region5: #{tpu_custom_call.1} parent=1 // pred_fallthru
      _
    // Predicated region
    $region6: #{tpu_custom_call.1} parent=1 // pred_check
      _
    $region7: #{tpu_custom_call.1} parent=1 // pred_check_branch
      %16 = sbr.rel (0) target = $region9
    $region8: #{tpu_custom_call.1} parent=1 // pred_region
      _
    $region9: #{tpu_custom_call.1} parent=1 // pred_fallthru
      _
    // Predicated region
    $region10: #{tpu_custom_call.1} parent=1 // pred_check
      _
    $region11: #{tpu_custom_call.1} parent=1 // pred_check_branch
      %18 = sbr.rel (0) target = $region13
    $region12: #{tpu_custom_call.1} parent=1 // pred_region
      _
    $region13: #{tpu_custom_call.1} parent=1 // pred_fallthru
      _
    // Predicated region
    $region14: #{tpu_custom_call.1} parent=1 // pred_check
      _
    $region15: #{tpu_custom_call.1} parent=1 // pred_check_branch
      %20 = sbr.rel (0) target = $region17
    $region16: #{tpu_custom_call.1} parent=1 // pred_region
      _
    $region17: #{tpu_custom_call.1} parent=1 // pred_fallthru
      _
    // Predicated region
    $region18: #{tpu_custom_call.1} parent=1 // pred_check
      _
    $region19: #{tpu_custom_call.1} parent=1 // pred_check_branch
      %22 = sbr.rel (0) target = $region21
    $region20: #{tpu_custom_call.1} parent=1 // pred_region
      _
    $region21: #{tpu_custom_call.1} parent=1 // pred_fallthru
      _
    // Predicated region
    $region22: #{tpu_custom_call.1} parent=1 // pred_check
      _
    $region23: #{tpu_custom_call.1} parent=1 // pred_check_branch
      %24 = sbr.rel (0) target = $region25
    $region24: #{tpu_custom_call.1} parent=1 // pred_region
      _
    $region25: #{tpu_custom_call.1} parent=1 // pred_fallthru
      _
    // Predicated region
    $region26: #{tpu_custom_call.1} parent=1 // pred_check
      _
    $region27: #{tpu_custom_call.1} parent=1 // pred_check_branch
      %26 = sbr.rel (0) target = $region29
    $region28: #{tpu_custom_call.1} parent=1 // pred_region
      _
    $region29: #{tpu_custom_call.1} parent=1 // pred_fallthru
      _
    %v27 = vld [vmem:[%s1] sm:$0xff]
    %v28 = vld [vmem:[%s1 + $0x8] sm:$0xff]
    %v29 = vld [vmem:[%s1 + $0x10] sm:$0xff]
    %v30 = vld [vmem:[%s1 + $0x18] sm:$0xff]
    %v31 = vld [vmem:[%s2] sm:$0x1]
    %v32 = vld [vmem:[%s3] sm:$0xff]
    %v33 = vld [vmem:[%s3 + $0x8] sm:$0xff]
    %v34 = vld [vmem:[%s3 + $0x10] sm:$0xff]
    %v35 = vld [vmem:[%s3 + $0x18] sm:$0xff]
    %v36 = vld [vmem:[%s3 + $0x20] sm:$0xff]
    %v37 = vld [vmem:[%s3 + $0x28] sm:$0xff]
    %v38 = vld [vmem:[%s3 + $0x30] sm:$0xff]
    %v39 = vld [vmem:[%s3 + $0x38] sm:$0xff]
    %v40 = vld [vmem:[%s3 + $0x40] sm:$0xff]
    %v41 = vld [vmem:[%s3 + $0x48] sm:$0xff]
    %v42 = vld [vmem:[%s3 + $0x50] sm:$0xff]
    %v43 = vld [vmem:[%s3 + $0x58] sm:$0xff]
    %v44 = vld [vmem:[%s3 + $0x60] sm:$0xff]
    %v45 = vld [vmem:[%s3 + $0x68] sm:$0xff]
    %v46 = vld [vmem:[%s3 + $0x70] sm:$0xff]
    %v47 = vld [vmem:[%s3 + $0x78] sm:$0xff]
    %v48 = vld [vmem:[%s4] sm:$0x1]
    %v49 = vld [vmem:[%s5] sm:$0xff]
    %v50 = vld [vmem:[%s5 + $0x8] sm:$0xff]
    %v51 = vld [vmem:[%s5 + $0x10] sm:$0xff]
    %v52 = vld [vmem:[%s5 + $0x18] sm:$0xff]
    %v53 = vld [vmem:[%s5 + $0x20] sm:$0xff]
    %v54 = vld [vmem:[%s5 + $0x28] sm:$0xff]
    %v55 = vld [vmem:[%s5 + $0x30] sm:$0xff]
    %v56 = vld [vmem:[%s5 + $0x38] sm:$0xff]
    %v57 = vld [vmem:[%s6] sm:$0x1]
    %v58 = vlaneseq
    %v59 = vand.u32 %v58, 127
    %vm60 = vcmp.lt.s32.totalorder %v59, 4
    %v61 = vld [vmem:[%s0] sm:$0xff]
    %v63 = vperm.slane %v31, 0
    %vm65 = vcmask 261120
    %v67 = vsel %vm65, %v61, 0
    %69 = vmatpush.msra.mxu0 0.0
    %70 = vmatpush.msra.mxu0 0.0
    %71 = vmatpush.msra.mxu0 0.0
    %72 = vmatpush.msra.mxu0 0.0
    %73 = vmatpush.msra.mxu0 0.0
    %74 = vmatpush.msra.mxu0 0.0
    %75 = vmatpush.msra.mxu0 0.0
    %76 = vmatpush.msra.mxu0 0.0
    %77 = vmatpush.msra.mxu0 0.0
    %78 = vmatpush.msra.mxu0 0.0
    %79 = vmatpush.msra.mxu0 0.0
    %80 = vmatpush.msra.mxu0 0.0
    %81 = vmatpush.msra.mxu0 %v30
    %82 = vmatpush.msra.mxu0 %v29
    %83 = vmatpush.msra.mxu0 %v28
    %84 = vmatpush.msra.mxu0 %v27
    %85 = vmatmul.f32.gmra.mxu0 %v67
    %v86 = vpop.f32.mrf.mxu0
    %v87 = vadd.f32 %v63, %v86
    %88 = vdwg.mxu0
    %vm89 = vcmp.ge.f32.partialorder %v87, 0.0
    %v90 = vmul.f32 %v87, 0.01
    %v91 = vsel %vm89, %v87, %v90
    %v93 = vperm.slane %v48, 0
    %95 = vmatpush.msra.mxu0 %v47
    %96 = vmatpush.msra.mxu0 %v46
    %97 = vmatpush.msra.mxu0 %v45
    %98 = vmatpush.msra.mxu0 %v44
    %99 = vmatpush.msra.mxu0 %v43
    %100 = vmatpush.msra.mxu0 %v42
    %101 = vmatpush.msra.mxu0 %v41
    %102 = vmatpush.msra.mxu0 %v40
    %103 = vmatpush.msra.mxu0 %v39
    %104 = vmatpush.msra.mxu0 %v38
    %105 = vmatpush.msra.mxu0 %v37
    %106 = vmatpush.msra.mxu0 %v36
    %107 = vmatpush.msra.mxu0 %v35
    %108 = vmatpush.msra.mxu0 %v34
    %109 = vmatpush.msra.mxu0 %v33
    %110 = vmatpush.msra.mxu0 %v32
    %111 = vmatmul.f32.gmra.mxu0 %v91
    %v112 = vpop.f32.mrf.mxu0
    %v113 = vadd.f32 %v93, %v112
    %114 = vdwg.mxu0
    %vm115 = vcmp.ge.f32.partialorder %v113, 0.0
    %v116 = vmul.f32 %v113, 0.01
    %v117 = vsel %vm115, %v113, %v116
    %v119 = vperm.slane %v57, 0
    %vm121 = vcmask 523264
    %v123 = vsel %vm121, %v117, 0
    %125 = vmatpush.msra.mxu0 0.0
    %126 = vmatpush.msra.mxu0 0.0
    %127 = vmatpush.msra.mxu0 0.0
    %128 = vmatpush.msra.mxu0 0.0
    %129 = vmatpush.msra.mxu0 0.0
    %130 = vmatpush.msra.mxu0 0.0
    %131 = vmatpush.msra.mxu0 0.0
    %132 = vmatpush.msra.mxu0 0.0
    %133 = vmatpush.msra.mxu0 %v56
    %134 = vmatpush.msra.mxu0 %v55
    %135 = vmatpush.msra.mxu0 %v54
    %136 = vmatpush.msra.mxu0 %v53
    %137 = vmatpush.msra.mxu0 %v52
    %138 = vmatpush.msra.mxu0 %v51
    %139 = vmatpush.msra.mxu0 %v50
    %140 = vmatpush.msra.mxu0 %v49
    %141 = vmatmul.f32.gmra.mxu0 %v123
    %v142 = vpop.f32.mrf.mxu0
    %v143 = vadd.f32 %v119, %v142
    %144 = vdwg.mxu0
    %v145 = vand.u32 2147483647, %v143
    %v146 = vadd.f32 %v145, 1.0
    %v147 = vrcp.pop %v146
    %v148 = vmul.f32 %v146, %v147
    %v149 = vsub.f32 1.0, %v148
    %v150 = vmul.f32 %v147, %v149
    %v151 = vadd.f32 %v147, %v150
    %vm152 = vweird.f32 %v146
    %vm153 = vweird.f32 %v147
    %vm154 = vmor %vm152, %vm153
    %v155 = vsel %vm154, %v147, %v151
    %v156 = vand.u32 2147483647, %v146
    %vm157 = vcmp.eq.f32.partialorder %v156, 8.507059e+37
    %v158 = vand.u32 %v146, 2147483648
    %v159 = vor.u32 1.1754944e-38, %v158
    %v160 = vsel %vm157, %v159, %v155
    %v161 = vmul.f32 %v143, %v160
    %v162 = vsel %vm60, %v161, %v143
    %vm163 = vcmask 39936
    %164 = vst.msk [vmem:[#allocation2] sm:$0xff] %vm163, %v162
    // Predicated region
    $region30: #{tpu_custom_call.1} parent=1 // pred_check
      _
    $region31: #{tpu_custom_call.1} parent=1 // pred_check_branch
      %166 = sbr.rel (0) target = $region33
    $region32: #{tpu_custom_call.1} parent=1 // pred_region
      %168 = vsyncadd [#allocation3], 0
      %s170 = sshll.u32 [#allocation2], 4
      %s171 = int_to_ptr.vmem [resolvable:$true] %s170
      %s172 = sshll.u32 %s7, 4
      %s173 = int_to_ptr.hbm [resolvable:$true] %s172
      %175 = dma.vmem_to_hbm [thread:$0]  %s171, 128, %s173, [#allocation3]
    $region33: #{tpu_custom_call.1} parent=1 // pred_fallthru
      _
    // Predicated region
    $region34: #{tpu_custom_call.1} parent=1 // pred_check
      _
    $region35: #{tpu_custom_call.1} parent=1 // pred_check_branch
      %177 = sbr.rel (0) target = $region37
    $region36: #{tpu_custom_call.1} parent=1 // pred_region
      %179 = dma.done [#allocation3], 128
    $region37: #{tpu_custom_call.1} parent=1 // pred_fallthru
      _
    %180 = vsyncpa [#allocation3], 1

</llo_original>
